<compile_context>
chip_gen: v7x
topology: tpu7x:2x2x1
jax: 0.10.0
libtpu: 0.0.40
codegen_flags: <defaults>
</compile_context>

<pallas_src>
import functools
import math

import numpy as np
import jax
import jax.numpy as jnp
from jax.experimental import pallas as pl
from jax.experimental.pallas import tpu as pltpu

_LANE = 128     # lane width (last dim of every tile)
_SUBLANE = 8    # f32 sublane width (second-to-last dim)


def _round_up(x, m):
    return (x + m - 1) // m * m


def _nbytes(shape, dtype):
    return math.prod(shape) * np.dtype(dtype).itemsize


def _layer_grid_kernel(x_ref, w1_ref, b1_ref, wh_ref, bh_ref, wo_ref, bo_ref,
                       o_ref, xp_ref, h_ref, *, in_dim, out_dim):
    """One grid step == one hidden layer; that layer's weights are streamed in.

    Grid = (batch_blocks, num_hidden).  `h_ref` (persistent VMEM scratch)
    carries the activation across layer steps; first layer gated on l == 0,
    final fc gated on l == num_hidden - 1.
    """
    l = pl.program_id(1)
    nl = pl.num_programs(1)
    rows = o_ref.shape[0]           # real rows in this batch block (static)

    @pl.when(l == 0)
    def _first_layer():
        # Zero-pad x into an aligned VMEM buffer once per batch block, then
        # first layer + ReLU (f32 accumulate, f32 epilogue, bf16 store).
        xp_ref[...] = jnp.zeros_like(xp_ref)
        xp_ref[:rows, :in_dim] = x_ref[...].astype(xp_ref.dtype)
        h0 = jnp.dot(xp_ref[...], w1_ref[...],
                     preferred_element_type=jnp.float32)
        h_ref[...] = jnp.maximum(h0 + b1_ref[...], 0.0).astype(h_ref.dtype)

    # Hidden layer l: streamed (h_pad, h_pad) weight block, bias+ReLU in f32.
    hh = jnp.dot(h_ref[...], wh_ref[...], preferred_element_type=jnp.float32)
    h_ref[...] = jnp.maximum(hh + bh_ref[...], 0.0).astype(h_ref.dtype)

    @pl.when(l == nl - 1)
    def _final_fc():
        y = jnp.dot(h_ref[...], wo_ref[...],
                    preferred_element_type=jnp.float32) + bo_ref[...]
        o_ref[...] = y[:rows, :out_dim].astype(o_ref.dtype)


def _no_hidden_kernel(x_ref, w1_ref, b1_ref, wo_ref, bo_ref, o_ref, xp_ref,
                      *, in_dim, out_dim):
    """num_layers == 1 variant: fc(relu(x@W1+b1)); no wh/bh refs, activation
    stays register-resident (no store->load round trip)."""
    rows = o_ref.shape[0]
    xp_ref[...] = jnp.zeros_like(xp_ref)
    xp_ref[:rows, :in_dim] = x_ref[...].astype(xp_ref.dtype)
    h = jnp.dot(xp_ref[...], w1_ref[...], preferred_element_type=jnp.float32)
    h = jnp.maximum(h + b1_ref[...], 0.0).astype(xp_ref.dtype)
    y = jnp.dot(h, wo_ref[...], preferred_element_type=jnp.float32) + bo_ref[...]
    o_ref[...] = y[:rows, :out_dim].astype(o_ref.dtype)


def init_params(key, input_dim, hidden_dim, num_layers, output_dim):
    """PyTorch-style (out_features, in_features) params matching the module."""
    params = []
    dims = [(input_dim, hidden_dim)]                       # first_layer
    dims += [(hidden_dim, hidden_dim)] * (num_layers - 1)  # self.layers
    dims += [(hidden_dim, output_dim)]                     # self.fc
    for (din, dout) in dims:
        key, kw, kb = jax.random.split(key, 3)
        bound = 1.0 / float(np.sqrt(din))
        w = jax.random.uniform(kw, (dout, din), jnp.float32, -bound, bound)
        b = jax.random.uniform(kb, (dout,), jnp.float32, -bound, bound)
        params.append((w, b))
    return params


def prepare_fused_params(params, input_dim, hidden_dim, output_dim,
                         weight_dtype=jnp.bfloat16):
    """One-time glue: transpose to [Din, Dout], zero-pad to 128 lanes, cast
    weights to bf16 (biases stay f32), stack hidden layers into [L, H, H]."""
    d_pad = _round_up(input_dim, _LANE)
    h_pad = _round_up(hidden_dim, _LANE)
    o_pad = _round_up(output_dim, _LANE)

    def pack(w, b, din_p, dout_p):
        dout, din = w.shape
        wt = (jnp.zeros((din_p, dout_p), jnp.float32)
              .at[:din, :dout].set(w.T)).astype(weight_dtype)
        bb = jnp.zeros((1, dout_p), jnp.float32).at[0, :dout].set(b)
        return wt, bb

    w1, b1 = pack(*params[0], d_pad, h_pad)
    hidden = params[1:-1]
    if hidden:
        whs, bhs = zip(*(pack(w, b, h_pad, h_pad) for (w, b) in hidden))
        wh, bh = jnp.stack(whs), jnp.stack(bhs)    # [L,h_pad,h_pad], [L,1,h_pad]
    else:
        wh, bh = None, None                        # no dummy DMA for L == 0
    wo, bo = pack(*params[-1], h_pad, o_pad)

    return dict(w1=w1, b1=b1, wh=wh, bh=bh, wo=wo, bo=bo,
                num_hidden=len(hidden), act_dtype=weight_dtype,
                dims=(input_dim, hidden_dim, output_dim))


def deep_fcn_forward(x, fused):
    """Forward pass of the whole network in one fused, layer-streamed kernel."""
    input_dim, _, output_dim = fused["dims"]
    act_dtype = fused["act_dtype"]
    num_hidden = fused["num_hidden"]
    B = x.shape[0]

    # Batch (row) blocking: one block at toy sizes; 256-row blocks for large,
    # 256-divisible batches.  The batch axis is "parallel" -> rows shard
    # across v7x's two TensorCores (no-op on v5e/v6e).
    tb = 256 if (B > 512 and B % 256 == 0) else B
    nb = B // tb
    tb_pad = _round_up(max(tb, _SUBLANE), _SUBLANE)

    d_pad, h_pad = fused["w1"].shape
    o_pad = fused["wo"].shape[1]
    wdt = fused["w1"].dtype

    # Explicit VMEM budget (double-buffered inputs + scratch) with headroom,
    # capped well under v7x's 64 MiB physical VMEM.
    est = 2 * (_nbytes((tb, input_dim), x.dtype)
               + _nbytes((d_pad, h_pad), wdt) + _nbytes((1, h_pad), jnp.float32)
               + _nbytes((h_pad, o_pad), wdt) + _nbytes((1, o_pad), jnp.float32)
               + _nbytes((tb, output_dim), jnp.float32))
    if num_hidden > 0:
        est += 2 * (_nbytes((h_pad, h_pad), wdt)
                    + _nbytes((1, h_pad), jnp.float32))
    est += _nbytes((tb_pad, d_pad), act_dtype) + _nbytes((tb_pad, h_pad), act_dtype)
    vmem_limit = int(min(max(2 * est + (2 << 20), 8 << 20), 48 << 20))

    out_shape = jax.ShapeDtypeStruct((B, output_dim), jnp.float32)

    if num_hidden > 0:
        kernel = functools.partial(_layer_grid_kernel,
                                   in_dim=input_dim, out_dim=output_dim)
        grid = (nb, num_hidden)
        in_specs = [
            pl.BlockSpec((tb, input_dim), lambda i, l: (i, 0)),          # x
            pl.BlockSpec((d_pad, h_pad), lambda i, l: (0, 0)),           # W1^T
            pl.BlockSpec((1, h_pad), lambda i, l: (0, 0)),               # b1
            pl.BlockSpec((None, h_pad, h_pad), lambda i, l: (l, 0, 0)),  # Wh^T[l]
            pl.BlockSpec((None, 1, h_pad), lambda i, l: (l, 0, 0)),      # bh[l]
            pl.BlockSpec((h_pad, o_pad), lambda i, l: (0, 0)),           # Wo^T
            pl.BlockSpec((1, o_pad), lambda i, l: (0, 0)),               # bo
        ]
        out_specs = pl.BlockSpec((tb, output_dim), lambda i, l: (i, 0))
        scratch = [pltpu.VMEM((tb_pad, d_pad), act_dtype),   # padded x
                   pltpu.VMEM((tb_pad, h_pad), act_dtype)]   # running activation
        dim_sem = ("parallel", "arbitrary")
        args = (x, fused["w1"], fused["b1"], fused["wh"], fused["bh"],
                fused["wo"], fused["bo"])
    else:
        kernel = functools.partial(_no_hidden_kernel,
                                   in_dim=input_dim, out_dim=output_dim)
        grid = (nb,)
        in_specs = [
            pl.BlockSpec((tb, input_dim), lambda i: (i, 0)),   # x
            pl.BlockSpec((d_pad, h_pad), lambda i: (0, 0)),    # W1^T
            pl.BlockSpec((1, h_pad), lambda i: (0, 0)),        # b1
            pl.BlockSpec((h_pad, o_pad), lambda i: (0, 0)),    # Wo^T
            pl.BlockSpec((1, o_pad), lambda i: (0, 0)),        # bo
        ]
        out_specs = pl.BlockSpec((tb, output_dim), lambda i: (i, 0))
        scratch = [pltpu.VMEM((tb_pad, d_pad), act_dtype)]
        dim_sem = ("parallel",)
        args = (x, fused["w1"], fused["b1"], fused["wo"], fused["bo"])

    return pl.pallas_call(
        kernel,
        out_shape=out_shape,
        grid=grid,
        in_specs=in_specs,
        out_specs=out_specs,
        scratch_shapes=scratch,
        compiler_params=pltpu.CompilerParams(
            dimension_semantics=dim_sem,
            vmem_limit_bytes=vmem_limit),
    )(*args)


if __name__ == "__main__":
    input_dim, hidden_dim, num_layers, output_dim = 16, 32, 3, 1
    batch = 8

    key = jax.random.PRNGKey(0)
    key, kx = jax.random.split(key)
    x = jax.random.normal(kx, (batch, input_dim), jnp.float32)

    params = init_params(key, input_dim, hidden_dim, num_layers, output_dim)
    fused = prepare_fused_params(params, input_dim, hidden_dim, output_dim)

    out = deep_fcn_forward(x, fused)
    jax.block_until_ready(out)
    assert out.shape == (batch, output_dim)

    # Reference 1: pure-JAX emulation of the kernel's math (bf16 weights and
    # activations, f32 accumulation, f32 bias/ReLU) -> tight tolerance.
    def ref_quant(xv, ps, adt):
        h = xv.astype(adt)
        y = None
        for i, (w, b) in enumerate(ps):
            y = jnp.dot(h, w.T.astype(adt),
                        preferred_element_type=jnp.float32) + b
            if i < len(ps) - 1:
                h = jnp.maximum(y, 0.0).astype(adt)
        return y

    ref_q = ref_quant(x, params, fused["act_dtype"])
    assert jnp.allclose(out, ref_q, atol=1e-4, rtol=1e-4), (
        "max err vs quantized ref: "
        + str(float(jnp.max(jnp.abs(out - ref_q)))))

    # Reference 2: full-f32 PyTorch semantics; loose tolerance accounts for
    # the bf16 weight/activation storage.
    ref = x
    for i, (w, b) in enumerate(params):
        ref = ref @ w.T + b
        if i != len(params) - 1:
            ref = jnp.maximum(ref, 0.0)
    assert jnp.allclose(out, ref, atol=5e-2, rtol=5e-2), (
        "max err vs f32 ref: " + str(float(jnp.max(jnp.abs(out - ref)))))

    print("KERNEL_OK")
</pallas_src>

<mosaic_0001>
module attributes {stable_mosaic.version = 11 : i64} {
  func.func @_layer_grid_kernel(%arg0: i32, %arg1: i32, %arg2: memref<8x16xf32, #tpu.memory_space<vmem>>, %arg3: memref<128x128xbf16, #tpu.memory_space<vmem>>, %arg4: memref<1x128xf32, #tpu.memory_space<vmem>>, %arg5: memref<1x128x128xbf16, #tpu.memory_space<vmem>>, %arg6: memref<1x1x128xf32, #tpu.memory_space<vmem>>, %arg7: memref<128x128xbf16, #tpu.memory_space<vmem>>, %arg8: memref<1x128xf32, #tpu.memory_space<vmem>>, %arg9: memref<8x1xf32, #tpu.memory_space<vmem>>, %arg10: memref<8x128xbf16, #tpu.memory_space<vmem>>, %arg11: memref<8x128xbf16, #tpu.memory_space<vmem>>) attributes {dimension_semantics = [#tpu.dimension_semantics<parallel>, #tpu.dimension_semantics<arbitrary>], iteration_bounds = array<i64: 1, 2>, scalar_prefetch = 0 : i64, scratch_operands = 2 : i64, tpu.core_type = #tpu.core_type<tc>, window_params = [{transform_indices = @transform_0, window_bounds = array<i64: 8, 16>}, {pipeline_mode = #tpu.pipeline_mode<synchronous>, transform_indices = @transform_1, window_bounds = array<i64: 128, 128>}, {pipeline_mode = #tpu.pipeline_mode<synchronous>, transform_indices = @transform_2, window_bounds = array<i64: 1, 128>}, {transform_indices = @transform_3, window_bounds = array<i64: 1, 128, 128>}, {transform_indices = @transform_4, window_bounds = array<i64: 1, 1, 128>}, {pipeline_mode = #tpu.pipeline_mode<synchronous>, transform_indices = @transform_5, window_bounds = array<i64: 128, 128>}, {pipeline_mode = #tpu.pipeline_mode<synchronous>, transform_indices = @transform_6, window_bounds = array<i64: 1, 128>}, {transform_indices = @transform_7, window_bounds = array<i64: 8, 1>}]} {
    %c0_i32 = arith.constant 0 : i32
    %0 = arith.cmpi eq, %arg1, %c0_i32 : i32
    %1 = arith.extui %0 : i1 to i32
    %c0_i32_0 = arith.constant 0 : i32
    %2 = arith.cmpi ne, %1, %c0_i32_0 : i32
    scf.if %2 {
      %cst_12 = arith.constant 0.000000e+00 : bf16
      %18 = vector.broadcast %cst_12 : bf16 to vector<8x128xbf16>
      %c0_13 = arith.constant 0 : index
      %c0_14 = arith.constant 0 : index
      %19 = vector.load %arg10[%c0_13, %c0_14] : memref<8x128xbf16, #tpu.memory_space<vmem>>, vector<8x128xbf16>
      tpu.vector_store %arg10[%c0_13, %c0_14], %18 {strides = array<i32>} : memref<8x128xbf16, #tpu.memory_space<vmem>>, vector<8x128xbf16>,
      %c0_15 = arith.constant 0 : index
      %c0_16 = arith.constant 0 : index
      %20 = vector.load %arg2[%c0_15, %c0_16] : memref<8x16xf32, #tpu.memory_space<vmem>>, vector<8x16xf32>
      %21 = arith.truncf %20 : vector<8x16xf32> to vector<8x16xbf16>
      %c0_17 = arith.constant 0 : index
      %c0_18 = arith.constant 0 : index
      %22 = vector.load %arg10[%c0_17, %c0_18] : memref<8x128xbf16, #tpu.memory_space<vmem>>, vector<8x16xbf16>
      tpu.vector_store %arg10[%c0_17, %c0_18], %21 {strides = array<i32>} : memref<8x128xbf16, #tpu.memory_space<vmem>>, vector<8x16xbf16>,
      %c0_19 = arith.constant 0 : index
      %c0_20 = arith.constant 0 : index
      %23 = vector.load %arg10[%c0_19, %c0_20] : memref<8x128xbf16, #tpu.memory_space<vmem>>, vector<8x128xbf16>
      %c0_21 = arith.constant 0 : index
      %c0_22 = arith.constant 0 : index
      %24 = vector.load %arg3[%c0_21, %c0_22] : memref<128x128xbf16, #tpu.memory_space<vmem>>, vector<128x128xbf16>
      %cst_23 = arith.constant dense<0.000000e+00> : vector<8x128xf32>
      %25 = tpu.matmul %23, %24, %cst_23 {dimension_numbers = #tpu.dot_dimension_numbers<[1], [0], [0], [1], [0, 0, 1, 1], [], []>} : vector<8x128xbf16>, vector<128x128xbf16>, vector<8x128xf32> -> vector<8x128xf32>
      %c0_24 = arith.constant 0 : index
      %c0_25 = arith.constant 0 : index
      %26 = vector.load %arg4[%c0_24, %c0_25] : memref<1x128xf32, #tpu.memory_space<vmem>>, vector<1x128xf32>
      %27 = vector.broadcast %26 : vector<1x128xf32> to vector<8x128xf32>
      %28 = arith.addf %25, %27 : vector<8x128xf32>
      %cst_26 = arith.constant 0.000000e+00 : f32
      %29 = vector.broadcast %cst_26 : f32 to vector<8x128xf32>
      %30 = arith.maximumf %28, %29 : vector<8x128xf32>
      %31 = arith.truncf %30 : vector<8x128xf32> to vector<8x128xbf16>
      %c0_27 = arith.constant 0 : index
      %c0_28 = arith.constant 0 : index
      %32 = vector.load %arg11[%c0_27, %c0_28] : memref<8x128xbf16, #tpu.memory_space<vmem>>, vector<8x128xbf16>
      tpu.vector_store %arg11[%c0_27, %c0_28], %31 {strides = array<i32>} : memref<8x128xbf16, #tpu.memory_space<vmem>>, vector<8x128xbf16>,
    } else {
    }
    %c0 = arith.constant 0 : index
    %c0_1 = arith.constant 0 : index
    %3 = vector.load %arg11[%c0, %c0_1] : memref<8x128xbf16, #tpu.memory_space<vmem>>, vector<8x128xbf16>
    %c0_2 = arith.constant 0 : index
    %c0_3 = arith.constant 0 : index
    %c0_4 = arith.constant 0 : index
    %4 = vector.load %arg5[%c0_2, %c0_3, %c0_4] : memref<1x128x128xbf16, #tpu.memory_space<vmem>>, vector<1x128x128xbf16>
    %5 = vector.shape_cast %4 : vector<1x128x128xbf16> to vector<128x128xbf16>
    %cst = arith.constant dense<0.000000e+00> : vector<8x128xf32>
    %6 = tpu.matmul %3, %5, %cst {dimension_numbers = #tpu.dot_dimension_numbers<[1], [0], [0], [1], [0, 0, 1, 1], [], []>} : vector<8x128xbf16>, vector<128x128xbf16>, vector<8x128xf32> -> vector<8x128xf32>
    %c0_5 = arith.constant 0 : index
    %c0_6 = arith.constant 0 : index
    %c0_7 = arith.constant 0 : index
    %7 = vector.load %arg6[%c0_5, %c0_6, %c0_7] : memref<1x1x128xf32, #tpu.memory_space<vmem>>, vector<1x1x128xf32>
    %8 = vector.shape_cast %7 : vector<1x1x128xf32> to vector<1x128xf32>
    %9 = vector.broadcast %8 : vector<1x128xf32> to vector<8x128xf32>
    %10 = arith.addf %6, %9 : vector<8x128xf32>
    %cst_8 = arith.constant 0.000000e+00 : f32
    %11 = vector.broadcast %cst_8 : f32 to vector<8x128xf32>
    %12 = arith.maximumf %10, %11 : vector<8x128xf32>
    %13 = arith.truncf %12 : vector<8x128xf32> to vector<8x128xbf16>
    %c0_9 = arith.constant 0 : index
    %c0_10 = arith.constant 0 : index
    %14 = vector.load %arg11[%c0_9, %c0_10] : memref<8x128xbf16, #tpu.memory_space<vmem>>, vector<8x128xbf16>
    tpu.vector_store %arg11[%c0_9, %c0_10], %13 {strides = array<i32>} : memref<8x128xbf16, #tpu.memory_space<vmem>>, vector<8x128xbf16>,
    %c1_i32 = arith.constant 1 : i32
    %15 = arith.cmpi eq, %arg1, %c1_i32 : i32
    %16 = arith.extui %15 : i1 to i32
    %c0_i32_11 = arith.constant 0 : i32
    %17 = arith.cmpi ne, %16, %c0_i32_11 : i32
    scf.if %17 {
      %c0_12 = arith.constant 0 : index
      %c0_13 = arith.constant 0 : index
      %18 = vector.load %arg11[%c0_12, %c0_13] : memref<8x128xbf16, #tpu.memory_space<vmem>>, vector<8x128xbf16>
      %c0_14 = arith.constant 0 : index
      %c0_15 = arith.constant 0 : index
      %19 = vector.load %arg7[%c0_14, %c0_15] : memref<128x128xbf16, #tpu.memory_space<vmem>>, vector<128x128xbf16>
      %cst_16 = arith.constant dense<0.000000e+00> : vector<8x128xf32>
      %20 = tpu.matmul %18, %19, %cst_16 {dimension_numbers = #tpu.dot_dimension_numbers<[1], [0], [0], [1], [0, 0, 1, 1], [], []>} : vector<8x128xbf16>, vector<128x128xbf16>, vector<8x128xf32> -> vector<8x128xf32>
      %c0_17 = arith.constant 0 : index
      %c0_18 = arith.constant 0 : index
      %21 = vector.load %arg8[%c0_17, %c0_18] : memref<1x128xf32, #tpu.memory_space<vmem>>, vector<1x128xf32>
      %22 = vector.broadcast %21 : vector<1x128xf32> to vector<8x128xf32>
      %23 = arith.addf %20, %22 : vector<8x128xf32>
      %24 = vector.extract_strided_slice %23 {offsets = [0, 0], sizes = [8, 1], strides = [1, 1]} : vector<8x128xf32> to vector<8x1xf32>
      %c0_19 = arith.constant 0 : index
      %c0_20 = arith.constant 0 : index
      %25 = vector.load %arg9[%c0_19, %c0_20] : memref<8x1xf32, #tpu.memory_space<vmem>>, vector<8x1xf32>
      tpu.vector_store %arg9[%c0_19, %c0_20], %24 {strides = array<i32>} : memref<8x1xf32, #tpu.memory_space<vmem>>, vector<8x1xf32>,
    } else {
    }
    return
  }
  func.func @transform_0(%arg0: i32, %arg1: i32) -> (i32, i32) {
    %c0_i32 = arith.constant 0 : i32
    %c0_i32_0 = arith.constant 0 : i32
    return %arg0, %c0_i32 : i32, i32
  }
  func.func @transform_1(%arg0: i32, %arg1: i32) -> (i32, i32) {
    %c0_i32 = arith.constant 0 : i32
    %c0_i32_0 = arith.constant 0 : i32
    %c0_i32_1 = arith.constant 0 : i32
    return %c0_i32, %c0_i32_0 : i32, i32
  }
  func.func @transform_2(%arg0: i32, %arg1: i32) -> (i32, i32) {
    %c0_i32 = arith.constant 0 : i32
    %c0_i32_0 = arith.constant 0 : i32
    %c0_i32_1 = arith.constant 0 : i32
    return %c0_i32, %c0_i32_0 : i32, i32
  }
  func.func @transform_3(%arg0: i32, %arg1: i32) -> (i32, i32, i32) {
    %c0_i32 = arith.constant 0 : i32
    %c0_i32_0 = arith.constant 0 : i32
    %c0_i32_1 = arith.constant 0 : i32
    return %arg1, %c0_i32, %c0_i32_0 : i32, i32, i32
  }
  func.func @transform_4(%arg0: i32, %arg1: i32) -> (i32, i32, i32) {
    %c0_i32 = arith.constant 0 : i32
    %c0_i32_0 = arith.constant 0 : i32
    %c0_i32_1 = arith.constant 0 : i32
    return %arg1, %c0_i32, %c0_i32_0 : i32, i32, i32
  }
  func.func @transform_5(%arg0: i32, %arg1: i32) -> (i32, i32) {
    %c0_i32 = arith.constant 0 : i32
    %c0_i32_0 = arith.constant 0 : i32
    %c0_i32_1 = arith.constant 0 : i32
    return %c0_i32, %c0_i32_0 : i32, i32
  }
  func.func @transform_6(%arg0: i32, %arg1: i32) -> (i32, i32) {
    %c0_i32 = arith.constant 0 : i32
    %c0_i32_0 = arith.constant 0 : i32
    %c0_i32_1 = arith.constant 0 : i32
    return %c0_i32, %c0_i32_0 : i32, i32
  }
  func.func @transform_7(%arg0: i32, %arg1: i32) -> (i32, i32) {
    %c0_i32 = arith.constant 0 : i32
    %c0_i32_0 = arith.constant 0 : i32
    return %arg0, %c0_i32 : i32, i32
  }
}

</mosaic_0001>

<llo_original>
// kernel: tpu_custom_call.1
$region0: #{tpu_custom_call.1}
  #allocation0 [shape = 'u32[]', space=smem, size = 0x4, offset = 0x4, fixed_abs, tag = 'smem constant byte address 0x4 - core index']
  #allocation1 [shape = 'u32[144,128]{1,0:T(1,128)}', space=vmem, size = 0x12000, scoped, tag = 'internal scratch']
  #allocation2 [shape = 'bf16[8,128]{1,0:T(8,128)(2,1)}', space=vmem, size = 0x800, scoped, tag = 'scratch operand']
  #allocation3 [shape = 'bf16[8,128]{1,0:T(8,128)(2,1)}', space=vmem, size = 0x800, scoped, tag = 'scratch operand']
  %s0 = inlined_call_operand.hbm [shape: f32[8,16], index: 0, kind: input, shape index: {}]
  %s1 = inlined_call_operand.hbm [shape: bf16[128,128], index: 1, kind: input, shape index: {}]
  %s2 = inlined_call_operand.vmem [shape: f32[1,128], index: 2, kind: input, shape index: {}]
  %s3 = inlined_call_operand.hbm [shape: bf16[2,128,128], index: 3, kind: input, shape index: {}]
  %s4 = inlined_call_operand.vmem [shape: f32[2,1,128], index: 4, kind: input, shape index: {}]
  %s5 = inlined_call_operand.hbm [shape: bf16[128,128], index: 5, kind: input, shape index: {}]
  %s6 = inlined_call_operand.vmem [shape: f32[1,128], index: 6, kind: input, shape index: {}]
  %s7 = inlined_call_operand.vmem [shape: f32[8,1], index: 7, kind: output, shape index: {}]
  %s8 = sld [smem:[#allocation0]]
  $region85: #{tpu_custom_call.1} parent=0
    _
  %s10 = ssub.s32 1, %s8
  %s11 = scalar_select 0, %s10, %s8
  $region1: #{tpu_custom_call.1} parent=0
    #allocation4 [shape = 'u8[4096]{0}', space=vmem, size = 0x1000, scoped, tag = 'input window, operand 0, single buffered']
    #allocation5 [shape = 's32[2]{0}', space=sflag, size = 0x8, scoped, tag = 'scoped memory for tpu_custom_call.1']
    #allocation6 [shape = 'u8[32768]{0}', space=vmem, size = 0x8000, scoped, tag = 'input window, operand 1, single buffered']
    #allocation7 [shape = 's32[1]{0}', space=sflag, size = 0x4, scoped, tag = 'scoped memory for tpu_custom_call.1']
    #allocation8 [shape = 'u8[65536]{0}', space=vmem, size = 0x10000, scoped, tag = 'input window, operand 3']
    #allocation9 [shape = 'u8[32768]{0}', space=vmem, size = 0x8000, scoped, tag = 'input window, operand 5, single buffered']
    %12 = vsyncpa [#allocation5], 0
    %13 = vsyncpa [#allocation7], 0
    loop: start=0, step=1, limit=4
    $region2: #{tpu_custom_call.1} parent=1 // loop_pre_header
      _
    $region3: #{tpu_custom_call.1} parent=1 // loop_header
      %s15 = sphi 0, %s19
      %p16 = scmp.ge.s32.totalorder %s15, 4
      %s22 = sphi 0, %s34
      %s23 = sphi 0, %s30
      %s24 = sphi 0, %s22
      %s25 = sphi 0, %s23
      %s26 = sphi 0, %s24
      %s27 = sphi 0, %s25
      %s37 = sphi 0, %s39
      %s40 = sphi 0, %s37
      %s41 = sphi 0, %s40
      %s57 = sphi 0, %s41
      %s61 = sphi 0, %s61
      %s63 = sphi 0, %s61
      %s64 = sphi 0, %s63
      %s78 = sphi 0, %s64
      %s82 = sphi 0, %s82
      %s84 = sphi 0, %s82
      %s85 = sphi 0, %s84
      %s99 = sphi 0, %s85
      %s105 = sphi 0, %s107
      %s108 = sphi 0, %s105
      %s109 = sphi 0, %s108
      %s125 = sphi 0, %s109
      %s131 = sphi 0, %s133
      %s134 = sphi 0, %s131
      %s135 = sphi 0, %s134
      %s151 = sphi 0, %s135
      %s155 = sphi 0, %s155
      %s157 = sphi 0, %s155
      %s158 = sphi 0, %s157
      %s172 = sphi 0, %s158
      %s176 = sphi 0, %s176
      %s178 = sphi 0, %s176
      %s179 = sphi 0, %s178
      %s193 = sphi 0, %s179
      %s199 = sphi 0, %s201
      %s202 = sphi 0, %s199
      %s203 = sphi 0, %s202
      %s219 = sphi 0, %s203
    $region4: #{tpu_custom_call.1} parent=1 // loop_header_branch
      %18 = sbr.rel (%p16) target = $region8
    $region5: #{tpu_custom_call.1} parent=1 // loop_body
      %s20 = ssub.s32 %s15, 1
      %s21 = ssub.s32 %s15, 2
      %s28 = sadd.s32 1, %s23
      %p29 = scmp.ge.s32.totalorder %s28, 2
      %s30 = scalar_select %p29, 0, %s28
      %s31 = sadd.s32 1, %s22
      %s32 = scalar_select %p29, %s31, %s22
      %p33 = scmp.ge.s32.totalorder %s32, 1
      %s34 = scalar_select %p33, 0, %s32
      %s35 = ssub.s32 %s22, %s34
      %p36 = scmp.eq.s32.totalorder %s35, 0
      %s38 = sadd.s32 %s37, 1
      %s39 = scalar_select %p36, %s37, %s38
      %p42 = pneg %p36
      %p43 = scmp.eq.s32.totalorder %s15, 1
      %p44 = por %p42, %p43
      %p45 = scmp.ne.s32.totalorder %s37, %s40
      %p46 = scmp.eq.s32.totalorder %s15, 0
      %p47 = por %p45, %p46
      %p48 = scmp.ne.s32.totalorder %s37, %s40
      %p49 = scmp.eq.s32.totalorder %s20, 1
      %p50 = por %p48, %p49
      %p51 = scmp.ne.s32.totalorder %s40, %s41
      %p52 = scmp.eq.s32.totalorder %s20, 0
      %p53 = por %p51, %p52
      %p54 = scmp.ne.s32.totalorder %s40, %s41
      %p55 = scmp.eq.s32.totalorder %s21, 1
      %p56 = por %p54, %p55
      %p58 = scmp.ne.s32.totalorder %s41, %s57
      %p59 = scmp.eq.s32.totalorder %s21, 0
      %p60 = por %p58, %p59
      %s62 = sadd.s32 %s61, 1
      %p65 = scmp.eq.s32.totalorder %s15, 1
      %p66 = scmp.ne.s32.totalorder %s61, %s63
      %p67 = scmp.eq.s32.totalorder %s15, 0
      %p68 = por %p66, %p67
      %p69 = scmp.ne.s32.totalorder %s61, %s63
      %p70 = scmp.eq.s32.totalorder %s20, 1
      %p71 = por %p69, %p70
      %p72 = scmp.ne.s32.totalorder %s63, %s64
      %p73 = scmp.eq.s32.totalorder %s20, 0
      %p74 = por %p72, %p73
      %p75 = scmp.ne.s32.totalorder %s63, %s64
      %p76 = scmp.eq.s32.totalorder %s21, 1
      %p77 = por %p75, %p76
      %p79 = scmp.ne.s32.totalorder %s64, %s78
      %p80 = scmp.eq.s32.totalorder %s21, 0
      %p81 = por %p79, %p80
      %s83 = sadd.s32 %s82, 1
      %p86 = scmp.eq.s32.totalorder %s15, 1
      %p87 = scmp.ne.s32.totalorder %s82, %s84
      %p88 = scmp.eq.s32.totalorder %s15, 0
      %p89 = por %p87, %p88
      %p90 = scmp.ne.s32.totalorder %s82, %s84
      %p91 = scmp.eq.s32.totalorder %s20, 1
      %p92 = por %p90, %p91
      %p93 = scmp.ne.s32.totalorder %s84, %s85
      %p94 = scmp.eq.s32.totalorder %s20, 0
      %p95 = por %p93, %p94
      %p96 = scmp.ne.s32.totalorder %s84, %s85
      %p97 = scmp.eq.s32.totalorder %s21, 1
      %p98 = por %p96, %p97
      %p100 = scmp.ne.s32.totalorder %s85, %s99
      %p101 = scmp.eq.s32.totalorder %s21, 0
      %p102 = por %p100, %p101
      %s103 = ssub.s32 %s23, %s30
      %p104 = scmp.eq.s32.totalorder %s103, 0
      %s106 = sadd.s32 %s105, 1
      %s107 = scalar_select %p104, %s105, %s106
      %p110 = pneg %p104
      %p111 = scmp.eq.s32.totalorder %s15, 1
      %p112 = por %p110, %p111
      %p113 = scmp.ne.s32.totalorder %s105, %s108
      %p114 = scmp.eq.s32.totalorder %s15, 0
      %p115 = por %p113, %p114
      %p116 = scmp.ne.s32.totalorder %s105, %s108
      %p117 = scmp.eq.s32.totalorder %s20, 1
      %p118 = por %p116, %p117
      %p119 = scmp.ne.s32.totalorder %s108, %s109
      %p120 = scmp.eq.s32.totalorder %s20, 0
      %p121 = por %p119, %p120
      %p122 = scmp.ne.s32.totalorder %s108, %s109
      %p123 = scmp.eq.s32.totalorder %s21, 1
      %p124 = por %p122, %p123
      %p126 = scmp.ne.s32.totalorder %s109, %s125
      %p127 = scmp.eq.s32.totalorder %s21, 0
      %p128 = por %p126, %p127
      %s129 = ssub.s32 %s23, %s30
      %p130 = scmp.eq.s32.totalorder %s129, 0
      %s132 = sadd.s32 %s131, 1
      %s133 = scalar_select %p130, %s131, %s132
      %p136 = pneg %p130
      %p137 = scmp.eq.s32.totalorder %s15, 1
      %p138 = por %p136, %p137
      %p139 = scmp.ne.s32.totalorder %s131, %s134
      %p140 = scmp.eq.s32.totalorder %s15, 0
      %p141 = por %p139, %p140
      %p142 = scmp.ne.s32.totalorder %s131, %s134
      %p143 = scmp.eq.s32.totalorder %s20, 1
      %p144 = por %p142, %p143
      %p145 = scmp.ne.s32.totalorder %s134, %s135
      %p146 = scmp.eq.s32.totalorder %s20, 0
      %p147 = por %p145, %p146
      %p148 = scmp.ne.s32.totalorder %s134, %s135
      %p149 = scmp.eq.s32.totalorder %s21, 1
      %p150 = por %p148, %p149
      %p152 = scmp.ne.s32.totalorder %s135, %s151
      %p153 = scmp.eq.s32.totalorder %s21, 0
      %p154 = por %p152, %p153
      %s156 = sadd.s32 %s155, 1
      %p159 = scmp.eq.s32.totalorder %s15, 1
      %p160 = scmp.ne.s32.totalorder %s155, %s157
      %p161 = scmp.eq.s32.totalorder %s15, 0
      %p162 = por %p160, %p161
      %p163 = scmp.ne.s32.totalorder %s155, %s157
      %p164 = scmp.eq.s32.totalorder %s20, 1
      %p165 = por %p163, %p164
      %p166 = scmp.ne.s32.totalorder %s157, %s158
      %p167 = scmp.eq.s32.totalorder %s20, 0
      %p168 = por %p166, %p167
      %p169 = scmp.ne.s32.totalorder %s157, %s158
      %p170 = scmp.eq.s32.totalorder %s21, 1
      %p171 = por %p169, %p170
      %p173 = scmp.ne.s32.totalorder %s158, %s172
      %p174 = scmp.eq.s32.totalorder %s21, 0
      %p175 = por %p173, %p174
      %s177 = sadd.s32 %s176, 1
      %p180 = scmp.eq.s32.totalorder %s15, 1
      %p181 = scmp.ne.s32.totalorder %s176, %s178
      %p182 = scmp.eq.s32.totalorder %s15, 0
      %p183 = por %p181, %p182
      %p184 = scmp.ne.s32.totalorder %s176, %s178
      %p185 = scmp.eq.s32.totalorder %s20, 1
      %p186 = por %p184, %p185
      %p187 = scmp.ne.s32.totalorder %s178, %s179
      %p188 = scmp.eq.s32.totalorder %s20, 0
      %p189 = por %p187, %p188
      %p190 = scmp.ne.s32.totalorder %s178, %s179
      %p191 = scmp.eq.s32.totalorder %s21, 1
      %p192 = por %p190, %p191
      %p194 = scmp.ne.s32.totalorder %s179, %s193
      %p195 = scmp.eq.s32.totalorder %s21, 0
      %p196 = por %p194, %p195
      %s197 = ssub.s32 %s22, %s34
      %p198 = scmp.eq.s32.totalorder %s197, 0
      %s200 = sadd.s32 %s199, 1
      %s201 = scalar_select %p198, %s199, %s200
      %p204 = pneg %p198
      %p205 = scmp.eq.s32.totalorder %s15, 1
      %p206 = por %p204, %p205
      %p207 = scmp.ne.s32.totalorder %s199, %s202
      %p208 = scmp.eq.s32.totalorder %s15, 0
      %p209 = por %p207, %p208
      %p210 = scmp.ne.s32.totalorder %s199, %s202
      %p211 = scmp.eq.s32.totalorder %s20, 1
      %p212 = por %p210, %p211
      %p213 = scmp.ne.s32.totalorder %s202, %s203
      %p214 = scmp.eq.s32.totalorder %s20, 0
      %p215 = por %p213, %p214
      %p216 = scmp.ne.s32.totalorder %s202, %s203
      %p217 = scmp.eq.s32.totalorder %s21, 1
      %p218 = por %p216, %p217
      %p220 = scmp.ne.s32.totalorder %s203, %s219
      %p221 = scmp.eq.s32.totalorder %s21, 0
      %p222 = por %p220, %p221
      %p223 = scmp.le.s32.totalorder 1, %s15
      %p224 = scmp.lt.s32.totalorder %s15, 3
      %p225 = pnand %p223, %p224
      %p226 = pneg %p225
      // Predicated region
      $region9: #{tpu_custom_call.1} parent=5 // pred_check
        _
      $region10: #{tpu_custom_call.1} parent=5 // pred_check_branch
        %228 = sbr.rel (%p225) target = $region12
      $region11: #{tpu_custom_call.1} parent=5 // pred_region
        %s229 = ssub.s32 %s15, 1
        // Predicated region
        $region13: #{tpu_custom_call.1} parent=11 // pred_check
          %p230 = pneg %p53
        $region14: #{tpu_custom_call.1} parent=11 // pred_check_branch
          %232 = sbr.rel (%p230) target = $region16
        $region15: #{tpu_custom_call.1} parent=11 // pred_region
          %s234 = ssub.s32 128, 128
          %235 = vsyncadd [#allocation5], %s234
          %s236 = smul.addr %s24, 128
          %s237 = scalar_lea.hbm %s0, %s236
          %s239 = sshll.u32 [#allocation4], 4
          %s240 = int_to_ptr.vmem [resolvable:$true] %s239
          %242 = dma.hbm_to_vmem [thread:$0]  %s237, 128, %s240, [#allocation5]
        $region16: #{tpu_custom_call.1} parent=11 // pred_fallthru
          _
        // Predicated region
        $region17: #{tpu_custom_call.1} parent=11 // pred_check
          %p243 = pneg %p74
        $region18: #{tpu_custom_call.1} parent=11 // pred_check_branch
          %245 = sbr.rel (%p243) target = $region20
        $region19: #{tpu_custom_call.1} parent=11 // pred_region
          %s247 = ssub.s32 1024, 1024
          %248 = vsyncadd [#allocation7], %s247
          %s249 = sshll.u32 [#allocation6], 4
          %s250 = int_to_ptr.vmem [resolvable:$true] %s249
          %255 = dma.hbm_to_vmem [thread:$0]  %s1, 1024, %s250, [#allocation7], 64, 64, 4
        $region20: #{tpu_custom_call.1} parent=11 // pred_fallthru
          _
        // Predicated region
        $region21: #{tpu_custom_call.1} parent=11 // pred_check
          %p256 = pneg %p95
        $region22: #{tpu_custom_call.1} parent=11 // pred_check_branch
          %258 = sbr.rel (%p256) target = $region24
        $region23: #{tpu_custom_call.1} parent=11 // pred_region
          _
        $region24: #{tpu_custom_call.1} parent=11 // pred_fallthru
          _
        // Predicated region
        $region25: #{tpu_custom_call.1} parent=11 // pred_check
          %p259 = pneg %p168
        $region26: #{tpu_custom_call.1} parent=11 // pred_check_branch
          %261 = sbr.rel (%p259) target = $region28
        $region27: #{tpu_custom_call.1} parent=11 // pred_region
          %s263 = ssub.s32 1024, 1024
          %264 = vsyncadd [#allocation7], %s263
          %s265 = sshll.u32 [#allocation9], 4
          %s266 = int_to_ptr.vmem [resolvable:$true] %s265
          %271 = dma.hbm_to_vmem [thread:$0]  %s5, 1024, %s266, [#allocation7], 64, 64, 4
        $region28: #{tpu_custom_call.1} parent=11 // pred_fallthru
          _
        // Predicated region
        $region29: #{tpu_custom_call.1} parent=11 // pred_check
          %p272 = pneg %p189
        $region30: #{tpu_custom_call.1} parent=11 // pred_check_branch
          %274 = sbr.rel (%p272) target = $region32
        $region31: #{tpu_custom_call.1} parent=11 // pred_region
          _
        $region32: #{tpu_custom_call.1} parent=11 // pred_fallthru
          _
      $region12: #{tpu_custom_call.1} parent=5 // pred_fallthru
        _
      %p275 = scmp.lt.s32.totalorder %s15, 2
      // Predicated region
      $region33: #{tpu_custom_call.1} parent=5 // pred_check
        %p276 = pneg %p275
      $region34: #{tpu_custom_call.1} parent=5 // pred_check_branch
        %278 = sbr.rel (%p276) target = $region36
      $region35: #{tpu_custom_call.1} parent=5 // pred_region
        // Predicated region
        $region37: #{tpu_custom_call.1} parent=35 // pred_check
          %p279 = pneg %p115
        $region38: #{tpu_custom_call.1} parent=35 // pred_check_branch
          %281 = sbr.rel (%p279) target = $region40
        $region39: #{tpu_custom_call.1} parent=35 // pred_region
          %s282 = sand.u32 %s15, 1
          %s283 = scalar_lea.sflag [#allocation5], %s282
          %s284 = sand.u32 %s105, 1
          %s285 = smul.addr %s284, 64
          %s286 = scalar_lea.vmem [#allocation8], %s285
          %s288 = ssub.s32 1024, 1024
          %289 = vsyncadd %s283, %s288
          %s290 = smul.addr %s23, 16
          %s291 = smul.addr %s290, 64
          %s292 = scalar_lea.hbm %s3, %s291
          %s293 = sshll.u32 %s286, 4
          %s294 = int_to_ptr.vmem [resolvable:$true] %s293
          %299 = dma.hbm_to_vmem [thread:$0]  %s292, 1024, %s294, %s283, 64, 64, 4
        $region40: #{tpu_custom_call.1} parent=35 // pred_fallthru
          _
        // Predicated region
        $region41: #{tpu_custom_call.1} parent=35 // pred_check
          %p300 = pneg %p141
        $region42: #{tpu_custom_call.1} parent=35 // pred_check_branch
          %302 = sbr.rel (%p300) target = $region44
        $region43: #{tpu_custom_call.1} parent=35 // pred_region
          %p303 = scmp.lt.s32.totalorder %s23, 1
          %s304 = scalar_select %p303, %s23, 1
          %s305 = scalar_lea.vmem %s4, %s304
        $region44: #{tpu_custom_call.1} parent=35 // pred_fallthru
          _
      $region36: #{tpu_custom_call.1} parent=5 // pred_fallthru
        _
      %p306 = scmp.le.s32.totalorder 1, %s15
      %p307 = scmp.lt.s32.totalorder %s15, 3
      %p308 = pnand %p306, %p307
      %p309 = pneg %p308
      // Predicated region
      $region45: #{tpu_custom_call.1} parent=5 // pred_check
        _
      $region46: #{tpu_custom_call.1} parent=5 // pred_check_branch
        %311 = sbr.rel (%p308) target = $region48
      $region47: #{tpu_custom_call.1} parent=5 // pred_region
        %s312 = ssub.s32 %s15, 1
        // Predicated region
        $region49: #{tpu_custom_call.1} parent=47 // pred_check
          %p313 = pneg %p53
        $region50: #{tpu_custom_call.1} parent=47 // pred_check_branch
          %315 = sbr.rel (%p313) target = $region52
        $region51: #{tpu_custom_call.1} parent=47 // pred_region
          %316 = dma.done [#allocation5], 128
        $region52: #{tpu_custom_call.1} parent=47 // pred_fallthru
          _
        // Predicated region
        $region53: #{tpu_custom_call.1} parent=47 // pred_check
          %p317 = pneg %p74
        $region54: #{tpu_custom_call.1} parent=47 // pred_check_branch
          %319 = sbr.rel (%p317) target = $region56
        $region55: #{tpu_custom_call.1} parent=47 // pred_region
          %320 = dma.done [#allocation7], 1024
        $region56: #{tpu_custom_call.1} parent=47 // pred_fallthru
          _
        %s321 = sand.u32 %s20, 1
        %s322 = scalar_lea.sflag [#allocation5], %s321
        %s323 = sand.u32 %s108, 1
        %s324 = smul.addr %s323, 64
        %s325 = scalar_lea.vmem [#allocation8], %s324
        // Predicated region
        $region57: #{tpu_custom_call.1} parent=47 // pred_check
          %p326 = pneg %p121
        $region58: #{tpu_custom_call.1} parent=47 // pred_check_branch
          %328 = sbr.rel (%p326) target = $region60
        $region59: #{tpu_custom_call.1} parent=47 // pred_region
          %329 = dma.done %s322, 1024
        $region60: #{tpu_custom_call.1} parent=47 // pred_fallthru
          _
        // Predicated region
        $region61: #{tpu_custom_call.1} parent=47 // pred_check
          %p330 = pneg %p168
        $region62: #{tpu_custom_call.1} parent=47 // pred_check_branch
          %332 = sbr.rel (%p330) target = $region64
        $region63: #{tpu_custom_call.1} parent=47 // pred_region
          %333 = dma.done [#allocation7], 1024
        $region64: #{tpu_custom_call.1} parent=47 // pred_fallthru
          _
        %p334 = pneg %p53
        %p335 = pneg %p50
        %p336 = pneg %p74
        %p337 = pneg %p71
        %p338 = pneg %p95
        %p339 = pneg %p92
        %s340 = sand.u32 %s20, 1
        %s341 = scalar_lea.sflag [#allocation5], %s340
        %s342 = sand.u32 %s108, 1
        %s343 = smul.addr %s342, 64
        %s344 = scalar_lea.vmem [#allocation8], %s343
        %p345 = pneg %p121
        %p346 = pneg %p118
        %p347 = scmp.lt.s32.totalorder %s25, 1
        %s348 = scalar_select %p347, %s25, 1
        %s349 = scalar_lea.vmem %s4, %s348
        %p350 = pneg %p147
        %p351 = pneg %p144
        %p352 = pneg %p168
        %p353 = pneg %p165
        %p354 = pneg %p189
        %p355 = pneg %p186
        %p356 = pneg %p215
        %p357 = pneg %p212
        %p358 = scmp.lt.s32.totalorder %s24, 0
        %s359 = scalar_select %p358, %s24, 0
        %s360 = smul.addr %s359, 8
        %s361 = scalar_lea.vmem %s7, %s360
        %p362 = scmp.lt.s32.totalorder %s25, 1
        %s363 = scalar_select %p362, %s25, 1
        %s364 = scalar_lea.vmem %s4, %s363
        %p365 = scmp.lt.s32.totalorder %s24, 0
        %s366 = scalar_select %p365, %s24, 0
        %s367 = smul.addr %s366, 8
        %s368 = scalar_lea.vmem %s7, %s367
        %p370 = scmp.eq.s32.totalorder %s25, 0
        // Predicated region
        $region65: #{tpu_custom_call.1} parent=47 // pred_check
          %p371 = pneg %p370
        $region66: #{tpu_custom_call.1} parent=47 // pred_check_branch
          %373 = sbr.rel (%p371) target = $region68
        $region67: #{tpu_custom_call.1} parent=47 // pred_region
          %374 = vst [vmem:[#allocation2] sm:$0xf] 0
          %v375 = vld [vmem:[#allocation4] sm:$0xff]
          %v376 = vpack.c.bf16 %v375, %v375
          %vm377 = vcmask 125952
          %378 = vst.msk [vmem:[#allocation2] sm:$0xf] %vm377, %v376
          %v379 = vld [vmem:[#allocation2] sm:$0xf]
          %v380 = vld [vmem:[#allocation6] sm:$0xf]
          %v381 = vld [vmem:[#allocation6 + $0x4] sm:$0xf]
          %v382 = vld [vmem:[#allocation6 + $0x8] sm:$0xf]
          %v383 = vld [vmem:[#allocation6 + $0xc] sm:$0xf]
          %v384 = vld [vmem:[#allocation6 + $0x10] sm:$0xf]
          %v385 = vld [vmem:[#allocation6 + $0x14] sm:$0xf]
          %v386 = vld [vmem:[#allocation6 + $0x18] sm:$0xf]
          %v387 = vld [vmem:[#allocation6 + $0x1c] sm:$0xf]
          %v388 = vld [vmem:[#allocation6 + $0x20] sm:$0xf]
          %v389 = vld [vmem:[#allocation6 + $0x24] sm:$0xf]
          %v390 = vld [vmem:[#allocation6 + $0x28] sm:$0xf]
          %v391 = vld [vmem:[#allocation6 + $0x2c] sm:$0xf]
          %v392 = vld [vmem:[#allocation6 + $0x30] sm:$0xf]
          %v393 = vld [vmem:[#allocation6 + $0x34] sm:$0xf]
          %v394 = vld [vmem:[#allocation6 + $0x38] sm:$0xf]
          %v395 = vld [vmem:[#allocation6 + $0x3c] sm:$0xf]
          %v396 = vld [vmem:[%s2] sm:$0x1]
          %v398 = vlaneseq
          %v399 = vshrl.u32 %v398, 7
          %v400 = vsub.s32 0, %v399
          %v401 = vrot.slane %v396, %v400
          %v419 = vunpack.c.l.b16 %v380
          %v420 = vunpack.c.l.b16 %v381
          %v421 = vunpack.c.l.b16 %v382
          %v422 = vunpack.c.l.b16 %v383
          %v423 = vunpack.c.l.b16 %v384
          %v424 = vunpack.c.l.b16 %v385
          %v425 = vunpack.c.l.b16 %v386
          %v426 = vunpack.c.l.b16 %v387
          %v427 = vunpack.c.l.b16 %v388
          %v428 = vunpack.c.l.b16 %v389
          %v429 = vunpack.c.l.b16 %v390
          %v430 = vunpack.c.l.b16 %v391
          %v431 = vunpack.c.l.b16 %v392
          %v432 = vunpack.c.l.b16 %v393
          %v433 = vunpack.c.l.b16 %v394
          %v434 = vunpack.c.l.b16 %v395
          %v435 = vpack.c.b16 %v420, %v419
          %v436 = vpack.c.b16 %v422, %v421
          %v437 = vpack.c.b16 %v424, %v423
          %v438 = vpack.c.b16 %v426, %v425
          %v439 = vpack.c.b16 %v428, %v427
          %v440 = vpack.c.b16 %v430, %v429
          %v441 = vpack.c.b16 %v432, %v431
          %v442 = vpack.c.b16 %v434, %v433
          %451 = vmatprep.subr.bf16.mxu0 0
          %452 = vmatpush1.bf16.msra.mxu0 %v435
          %453 = vmatprep.subr.bf16.mxu0 0
          %454 = vmatpush1.bf16.msra.mxu0 %v436
          %455 = vmatprep.subr.bf16.mxu0 0
          %456 = vmatpush1.bf16.msra.mxu0 %v437
          %457 = vmatprep.subr.bf16.mxu0 0
          %458 = vmatpush1.bf16.msra.mxu0 %v438
          %459 = vmatprep.subr.bf16.mxu0 0
          %460 = vmatpush1.bf16.msra.mxu0 %v439
          %461 = vmatprep.subr.bf16.mxu0 0
          %462 = vmatpush1.bf16.msra.mxu0 %v440
          %463 = vmatprep.subr.bf16.mxu0 0
          %464 = vmatpush1.bf16.msra.mxu0 %v441
          %465 = vmatprep.subr.bf16.mxu0 0
          %466 = vmatpush1.bf16.msra.mxu0 %v442
          %467 = vmatprep.subr.bf16.mxu0 0
          %468 = vmatpush1.bf16.msra.mxu0 0
          %469 = vmatprep.subr.bf16.mxu0 0
          %470 = vmatpush1.bf16.msra.mxu0 0
          %471 = vmatprep.subr.bf16.mxu0 0
          %472 = vmatpush1.bf16.msra.mxu0 0
          %473 = vmatprep.subr.bf16.mxu0 0
          %474 = vmatpush1.bf16.msra.mxu0 0
          %475 = vmatprep.subr.bf16.mxu0 0
          %476 = vmatpush1.bf16.msra.mxu0 0
          %477 = vmatprep.subr.bf16.mxu0 0
          %478 = vmatpush1.bf16.msra.mxu0 0
          %479 = vmatprep.subr.bf16.mxu0 0
          %480 = vmatpush1.bf16.msra.mxu0 0
          %481 = vmatprep.subr.bf16.mxu0 0
          %482 = vmatpush1.bf16.msra.mxu0 0
          %483 = vmatprep.mubr.bf16.mxu0 0
          %484 = vmatmul.mubr.bf16.gmra.mrb[0].mxu0 %v379
          %v485 = vpop.f32.mrb[0].mxu0
          %v486 = vadd.f32 %v401, %v485
          %v487 = vpop.f32.mrb[0].mxu0
          %v488 = vpop.f32.mrb[0].mxu0
          %v489 = vpop.f32.mrb[0].mxu0
          %490 = vdwg.mxu0
          %v491 = vmax.f32 %v486, 0.0
          %v492 = vpack.c.bf16 %v491, %v491
          %493 = vst [vmem:[#allocation3] sm:$0xf] %v492
        $region68: #{tpu_custom_call.1} parent=47 // pred_fallthru
          _
        %v494 = vld [vmem:[#allocation3] sm:$0xf]
        %v495 = vld [vmem:[%s325] sm:$0xf]
        %v496 = vld [vmem:[%s325 + $0x4] sm:$0xf]
        %v497 = vld [vmem:[%s325 + $0x8] sm:$0xf]
        %v498 = vld [vmem:[%s325 + $0xc] sm:$0xf]
        %v499 = vld [vmem:[%s325 + $0x10] sm:$0xf]
        %v500 = vld [vmem:[%s325 + $0x14] sm:$0xf]
        %v501 = vld [vmem:[%s325 + $0x18] sm:$0xf]
        %v502 = vld [vmem:[%s325 + $0x1c] sm:$0xf]
        %v503 = vld [vmem:[%s325 + $0x20] sm:$0xf]
        %v504 = vld [vmem:[%s325 + $0x24] sm:$0xf]
        %v505 = vld [vmem:[%s325 + $0x28] sm:$0xf]
        %v506 = vld [vmem:[%s325 + $0x2c] sm:$0xf]
        %v507 = vld [vmem:[%s325 + $0x30] sm:$0xf]
        %v508 = vld [vmem:[%s325 + $0x34] sm:$0xf]
        %v509 = vld [vmem:[%s325 + $0x38] sm:$0xf]
        %v510 = vld [vmem:[%s325 + $0x3c] sm:$0xf]
        %v511 = vld [vmem:[%s364] sm:$0x1]
        %v513 = vlaneseq
        %v514 = vshrl.u32 %v513, 7
        %v515 = vsub.s32 0, %v514
        %v516 = vrot.slane %v511, %v515
        %v534 = vunpack.c.l.b16 %v495
        %v535 = vunpack.c.l.b16 %v496
        %v536 = vunpack.c.l.b16 %v497
        %v537 = vunpack.c.l.b16 %v498
        %v538 = vunpack.c.l.b16 %v499
        %v539 = vunpack.c.l.b16 %v500
        %v540 = vunpack.c.l.b16 %v501
        %v541 = vunpack.c.l.b16 %v502
        %v542 = vunpack.c.l.b16 %v503
        %v543 = vunpack.c.l.b16 %v504
        %v544 = vunpack.c.l.b16 %v505
        %v545 = vunpack.c.l.b16 %v506
        %v546 = vunpack.c.l.b16 %v507
        %v547 = vunpack.c.l.b16 %v508
        %v548 = vunpack.c.l.b16 %v509
        %v549 = vunpack.c.l.b16 %v510
        %v550 = vpack.c.b16 %v535, %v534
        %v551 = vpack.c.b16 %v537, %v536
        %v552 = vpack.c.b16 %v539, %v538
        %v553 = vpack.c.b16 %v541, %v540
        %v554 = vpack.c.b16 %v543, %v542
        %v555 = vpack.c.b16 %v545, %v544
        %v556 = vpack.c.b16 %v547, %v546
        %v557 = vpack.c.b16 %v549, %v548
        %566 = vmatprep.subr.bf16.mxu0 0
        %567 = vmatpush1.bf16.msra.mxu0 %v550
        %568 = vmatprep.subr.bf16.mxu0 0
        %569 = vmatpush1.bf16.msra.mxu0 %v551
        %570 = vmatprep.subr.bf16.mxu0 0
        %571 = vmatpush1.bf16.msra.mxu0 %v552
        %572 = vmatprep.subr.bf16.mxu0 0
        %573 = vmatpush1.bf16.msra.mxu0 %v553
        %574 = vmatprep.subr.bf16.mxu0 0
        %575 = vmatpush1.bf16.msra.mxu0 %v554
        %576 = vmatprep.subr.bf16.mxu0 0
        %577 = vmatpush1.bf16.msra.mxu0 %v555
        %578 = vmatprep.subr.bf16.mxu0 0
        %579 = vmatpush1.bf16.msra.mxu0 %v556
        %580 = vmatprep.subr.bf16.mxu0 0
        %581 = vmatpush1.bf16.msra.mxu0 %v557
        %582 = vmatprep.subr.bf16.mxu0 0
        %583 = vmatpush1.bf16.msra.mxu0 0
        %584 = vmatprep.subr.bf16.mxu0 0
        %585 = vmatpush1.bf16.msra.mxu0 0
        %586 = vmatprep.subr.bf16.mxu0 0
        %587 = vmatpush1.bf16.msra.mxu0 0
        %588 = vmatprep.subr.bf16.mxu0 0
        %589 = vmatpush1.bf16.msra.mxu0 0
        %590 = vmatprep.subr.bf16.mxu0 0
        %591 = vmatpush1.bf16.msra.mxu0 0
        %592 = vmatprep.subr.bf16.mxu0 0
        %593 = vmatpush1.bf16.msra.mxu0 0
        %594 = vmatprep.subr.bf16.mxu0 0
        %595 = vmatpush1.bf16.msra.mxu0 0
        %596 = vmatprep.subr.bf16.mxu0 0
        %597 = vmatpush1.bf16.msra.mxu0 0
        %598 = vmatprep.mubr.bf16.mxu0 0
        %599 = vmatmul.mubr.bf16.gmra.mrb[0].mxu0 %v494
        %v600 = vpop.f32.mrb[0].mxu0
        %v601 = vadd.f32 %v516, %v600
        %v602 = vpop.f32.mrb[0].mxu0
        %v603 = vpop.f32.mrb[0].mxu0
        %v604 = vpop.f32.mrb[0].mxu0
        %605 = vdwg.mxu0
        %v606 = vmax.f32 %v601, 0.0
        %v607 = vpack.c.bf16 %v606, %v606
        %608 = vst [vmem:[#allocation3] sm:$0xf] %v607
        %p609 = scmp.eq.s32.totalorder %s25, 1
        // Predicated region
        $region69: #{tpu_custom_call.1} parent=47 // pred_check
          %p610 = pneg %p609
        $region70: #{tpu_custom_call.1} parent=47 // pred_check_branch
          %612 = sbr.rel (%p610) target = $region72
        $region71: #{tpu_custom_call.1} parent=47 // pred_region
          %v613 = vld [vmem:[#allocation3] sm:$0xf]
          %v614 = vld [vmem:[#allocation9] sm:$0xf]
          %v615 = vld [vmem:[#allocation9 + $0x4] sm:$0xf]
          %v616 = vld [vmem:[#allocation9 + $0x8] sm:$0xf]
          %v617 = vld [vmem:[#allocation9 + $0xc] sm:$0xf]
          %v618 = vld [vmem:[#allocation9 + $0x10] sm:$0xf]
          %v619 = vld [vmem:[#allocation9 + $0x14] sm:$0xf]
          %v620 = vld [vmem:[#allocation9 + $0x18] sm:$0xf]
          %v621 = vld [vmem:[#allocation9 + $0x1c] sm:$0xf]
          %v622 = vld [vmem:[#allocation9 + $0x20] sm:$0xf]
          %v623 = vld [vmem:[#allocation9 + $0x24] sm:$0xf]
          %v624 = vld [vmem:[#allocation9 + $0x28] sm:$0xf]
          %v625 = vld [vmem:[#allocation9 + $0x2c] sm:$0xf]
          %v626 = vld [vmem:[#allocation9 + $0x30] sm:$0xf]
          %v627 = vld [vmem:[#allocation9 + $0x34] sm:$0xf]
          %v628 = vld [vmem:[#allocation9 + $0x38] sm:$0xf]
          %v629 = vld [vmem:[#allocation9 + $0x3c] sm:$0xf]
          %v630 = vld [vmem:[%s6] sm:$0x1]
          %v632 = vlaneseq
          %v633 = vshrl.u32 %v632, 7
          %v634 = vsub.s32 0, %v633
          %v635 = vrot.slane %v630, %v634
          %v653 = vunpack.c.l.b16 %v614
          %v654 = vunpack.c.l.b16 %v615
          %v655 = vunpack.c.l.b16 %v616
          %v656 = vunpack.c.l.b16 %v617
          %v657 = vunpack.c.l.b16 %v618
          %v658 = vunpack.c.l.b16 %v619
          %v659 = vunpack.c.l.b16 %v620
          %v660 = vunpack.c.l.b16 %v621
          %v661 = vunpack.c.l.b16 %v622
          %v662 = vunpack.c.l.b16 %v623
          %v663 = vunpack.c.l.b16 %v624
          %v664 = vunpack.c.l.b16 %v625
          %v665 = vunpack.c.l.b16 %v626
          %v666 = vunpack.c.l.b16 %v627
          %v667 = vunpack.c.l.b16 %v628
          %v668 = vunpack.c.l.b16 %v629
          %v669 = vpack.c.b16 %v654, %v653
          %v670 = vpack.c.b16 %v656, %v655
          %v671 = vpack.c.b16 %v658, %v657
          %v672 = vpack.c.b16 %v660, %v659
          %v673 = vpack.c.b16 %v662, %v661
          %v674 = vpack.c.b16 %v664, %v663
          %v675 = vpack.c.b16 %v666, %v665
          %v676 = vpack.c.b16 %v668, %v667
          %685 = vmatprep.subr.bf16.mxu0 0
          %686 = vmatpush1.bf16.msra.mxu0 %v669
          %687 = vmatprep.subr.bf16.mxu0 0
          %688 = vmatpush1.bf16.msra.mxu0 %v670
          %689 = vmatprep.subr.bf16.mxu0 0
          %690 = vmatpush1.bf16.msra.mxu0 %v671
          %691 = vmatprep.subr.bf16.mxu0 0
          %692 = vmatpush1.bf16.msra.mxu0 %v672
          %693 = vmatprep.subr.bf16.mxu0 0
          %694 = vmatpush1.bf16.msra.mxu0 %v673
          %695 = vmatprep.subr.bf16.mxu0 0
          %696 = vmatpush1.bf16.msra.mxu0 %v674
          %697 = vmatprep.subr.bf16.mxu0 0
          %698 = vmatpush1.bf16.msra.mxu0 %v675
          %699 = vmatprep.subr.bf16.mxu0 0
          %700 = vmatpush1.bf16.msra.mxu0 %v676
          %701 = vmatprep.subr.bf16.mxu0 0
          %702 = vmatpush1.bf16.msra.mxu0 0
          %703 = vmatprep.subr.bf16.mxu0 0
          %704 = vmatpush1.bf16.msra.mxu0 0
          %705 = vmatprep.subr.bf16.mxu0 0
          %706 = vmatpush1.bf16.msra.mxu0 0
          %707 = vmatprep.subr.bf16.mxu0 0
          %708 = vmatpush1.bf16.msra.mxu0 0
          %709 = vmatprep.subr.bf16.mxu0 0
          %710 = vmatpush1.bf16.msra.mxu0 0
          %711 = vmatprep.subr.bf16.mxu0 0
          %712 = vmatpush1.bf16.msra.mxu0 0
          %713 = vmatprep.subr.bf16.mxu0 0
          %714 = vmatpush1.bf16.msra.mxu0 0
          %715 = vmatprep.subr.bf16.mxu0 0
          %716 = vmatpush1.bf16.msra.mxu0 0
          %717 = vmatprep.mubr.bf16.mxu0 0
          %718 = vmatmul.mubr.bf16.gmra.mrb[0].mxu0 %v613
          %v719 = vpop.f32.mrb[0].mxu0
          %v720 = vadd.f32 %v635, %v719
          %v721 = vpop.f32.mrb[0].mxu0
          %v722 = vpop.f32.mrb[0].mxu0
          %v723 = vpop.f32.mrb[0].mxu0
          %724 = vdwg.mxu0
          %vm725 = vcmask 7168
          %726 = vst.msk [vmem:[%s368] sm:$0xff] %vm725, %v720
        $region72: #{tpu_custom_call.1} parent=47 // pred_fallthru
          _
        %p727 = scmp.lt.s32.totalorder %s24, 0
        %s728 = scalar_select %p727, %s24, 0
        %s729 = smul.addr %s728, 8
        %s730 = scalar_lea.vmem %s7, %s729
        // Predicated region
        $region73: #{tpu_custom_call.1} parent=47 // pred_check
          %p731 = pneg %p212
        $region74: #{tpu_custom_call.1} parent=47 // pred_check_branch
          %733 = sbr.rel (%p731) target = $region76
        $region75: #{tpu_custom_call.1} parent=47 // pred_region
          _
        $region76: #{tpu_custom_call.1} parent=47 // pred_fallthru
          _
        // Predicated region
        $region77: #{tpu_custom_call.1} parent=47 // pred_check
          %p734 = pneg %p212
        $region78: #{tpu_custom_call.1} parent=47 // pred_check_branch
          %736 = sbr.rel (%p734) target = $region80
        $region79: #{tpu_custom_call.1} parent=47 // pred_region
          %p737 = scmp.lt.s32.totalorder %s24, 0
          %s738 = scalar_select %p737, %s24, 0
          %s739 = smul.addr %s738, 8
          %s740 = scalar_lea.vmem %s7, %s739
        $region80: #{tpu_custom_call.1} parent=47 // pred_fallthru
          _
      $region48: #{tpu_custom_call.1} parent=5 // pred_fallthru
        _
      %p741 = scmp.le.s32.totalorder 2, %s15
      // Predicated region
      $region81: #{tpu_custom_call.1} parent=5 // pred_check
        %p742 = pneg %p741
      $region82: #{tpu_custom_call.1} parent=5 // pred_check_branch
        %744 = sbr.rel (%p742) target = $region84
      $region83: #{tpu_custom_call.1} parent=5 // pred_region
        %s745 = ssub.s32 %s15, 2
      $region84: #{tpu_custom_call.1} parent=5 // pred_fallthru
        _
    $region6: #{tpu_custom_call.1} parent=1 // loop_footer
      %s19 = sadd.s32 1, %s15
    $region7: #{tpu_custom_call.1} parent=1 // loop_footer_branch
      %14 = sbr.rel target = $region3
    $region8: #{tpu_custom_call.1} parent=1 // loop_exit
      _
    %746 = vsyncpa [#allocation5], 1
    %s747 = scalar_lea.sflag [#allocation5], 1
    %748 = vsyncpa %s747, 1
    %749 = vsyncpa [#allocation7], 1

</llo_original>
